<compile_context>
chip_gen: v7x
topology: tpu7x:2x2x1
jax: 0.10.0
libtpu: 0.0.40
codegen_flags: <defaults>
</compile_context>

<pallas_src>
import math
from functools import partial

import jax
import jax.numpy as jnp
from jax.experimental import pallas as pl
from jax.experimental.pallas import tpu as pltpu


# ---------------------------------------------------------------------------
# Fused Pallas kernel
# ---------------------------------------------------------------------------

def head_fused_kernel(pack, tok_k, dim,
                      p_ref, w1_ref, bnb_ref, w2_ref, b2_ref, s_ref, g_ref,
                      lb_ref, o_ref):
    """One grid step = one (batch image, block of packed token rows).

    Static:
      pack : tokens packed per 128-lane row (4 when dim == 32)
      tok_k: lanes per token in the patch stream (= 4 taps * K1p = 128)
      dim  : output channels

    Refs:
      p_ref:   (TG, pack*tok_k)        bf16  conv1 patches, pack tokens / row
      w1_ref:  (tok_k, 4*dim)          bf16  block-diag BN-folded conv1 weight (resident)
      bnb_ref: (1, pack*4*dim)         f32   folded BN bias, tiled             (resident)
      w2_ref:  (pack*4*dim, pack*dim)  bf16  block-diag tap-concat conv2 weight(resident)
      b2_ref:  (1, pack*dim)           f32   conv2 bias, tiled                 (resident)
      s_ref:   (pack*dim, pack*dim)    f32   block-ones per-token sum matrix   (resident)
      g_ref:   (1, pack*dim)           f32   LayerNorm weight, tiled           (resident)
      lb_ref:  (1, pack*dim)           f32   LayerNorm bias, tiled             (resident)
      o_ref:   (TG, pack*dim)          f32   lane-dense output slab
    """
    inv_d = 1.0 / dim
    w1 = w1_ref[...]

    # conv1 (+ folded BN scale) for each of the `pack` tokens in a row: full
    # 128-wide matmuls.  Lane-concat of 128-wide pieces is vreg-granular.
    parts = [jnp.dot(p_ref[:, u * tok_k:(u + 1) * tok_k], w1,
                     preferred_element_type=jnp.float32)
             for u in range(pack)]
    a1 = parts[0] if pack == 1 else jnp.concatenate(parts, axis=-1)

    # BN bias + ReLU on full-width lanes, cast to bf16 for the MXU.
    y1 = jnp.maximum(a1 + bnb_ref[...], 0.0).astype(w2_ref.dtype)

    # conv2 (2x2, stride 2): single matmul — the K-sum over the block-diagonal
    # tap-concatenated weight is exactly the sum over the 4 taps.  + bias.
    z = jnp.dot(y1, w2_ref[...], preferred_element_type=jnp.float32) + b2_ref[...]

    # LayerNorm per token (each token = one 32-lane group of the 128-lane row).
    # Group sums via a block-ones matmul; two-pass (subtract-mean) variance.
    zsum = jnp.dot(z, s_ref[...], preferred_element_type=jnp.float32)
    mean = zsum * inv_d
    c = z - mean
    vsum = jnp.dot(c * c, s_ref[...], preferred_element_type=jnp.float32)
    y = c * jax.lax.rsqrt(vsum * inv_d + 1e-5)
    o_ref[...] = (y * g_ref[...] + lb_ref[...]).astype(o_ref.dtype)


# ---------------------------------------------------------------------------
# Glue: im2col, weight reshapes, tiling heuristics
# ---------------------------------------------------------------------------

def _im2col(x_nhwc, kh, kw, stride, pad):
    """Extract (kh, kw) patches. Returns (B, Ho, Wo, kh*kw*C), Ho, Wo."""
    if pad > 0:
        x_nhwc = jnp.pad(x_nhwc, ((0, 0), (pad, pad), (pad, pad), (0, 0)))
    B, H, W, C = x_nhwc.shape
    Ho = (H - kh) // stride + 1
    Wo = (W - kw) // stride + 1
    cols = []
    for i in range(kh):
        for j in range(kw):
            cols.append(x_nhwc[:, i:i + Ho * stride:stride,
                               j:j + Wo * stride:stride, :])
    patches = jnp.stack(cols, axis=-2)                 # (B, Ho, Wo, kh*kw, C)
    return patches.reshape(B, Ho, Wo, kh * kw * C), Ho, Wo


def _conv_weight_to_matmul(w_oihw):
    """PyTorch conv weight (O, I, kh, kw) -> (kh*kw*I, O), matching _im2col order."""
    O, I, kh, kw = w_oihw.shape
    return jnp.transpose(w_oihw, (2, 3, 1, 0)).reshape(kh * kw * I, O)


def _pick_row_block(H2, W2, pack, target_tokens=4096):
    """Rows of the final token map per grid step.

    Constraints: divides H2; tile token count divisible by `pack`; packed row
    count multiple of 8 (sublane alignment) unless the tile is the whole
    image; <= target_tokens (amortizes per-step overhead, ~a few MiB VMEM).
    """
    cands = []
    for rb in range(1, H2 + 1):
        if H2 % rb:
            continue
        t = rb * W2
        if t % pack:
            continue
        if rb != H2 and (t // pack) % 8:
            continue
        cands.append(rb)
    fitting = [rb for rb in cands if rb * W2 <= target_tokens]
    if fitting:
        return max(fitting)
    return min(cands) if cands else H2


def init_head_params(key, dim, head_conv=3):
    """Deterministic synthetic parameters with the same shapes as Head.__init__."""
    ks = jax.random.split(key, 8)
    fan_in1 = 3 * head_conv * head_conv
    w1 = jax.random.normal(ks[0], (dim, 3, head_conv, head_conv), jnp.float32) / math.sqrt(fan_in1)
    bn_gamma = 1.0 + 0.1 * jax.random.normal(ks[1], (dim,), jnp.float32)
    bn_beta = 0.1 * jax.random.normal(ks[2], (dim,), jnp.float32)
    bn_mean = 0.1 * jax.random.normal(ks[3], (dim,), jnp.float32)
    bn_var = 1.0 + 0.1 * jax.random.uniform(ks[4], (dim,), jnp.float32)
    fan_in2 = dim * 2 * 2
    w2 = jax.random.normal(ks[5], (dim, dim, 2, 2), jnp.float32) / math.sqrt(fan_in2)
    b2 = 0.1 * jax.random.normal(ks[6], (dim,), jnp.float32)
    ln_gamma = jnp.ones((dim,), jnp.float32)
    ln_beta = jnp.zeros((dim,), jnp.float32)
    return dict(w1=w1, bn_gamma=bn_gamma, bn_beta=bn_beta, bn_mean=bn_mean,
                bn_var=bn_var, w2=w2, b2=b2, ln_gamma=ln_gamma, ln_beta=ln_beta)


# ---------------------------------------------------------------------------
# Wrapper: Head.forward
# ---------------------------------------------------------------------------

def head_forward(params, x_nchw, head_conv=3):
    """Replicates Head.forward(x, mask=None). Returns (tokens, H, W)."""
    B = x_nchw.shape[0]
    dim = params["w1"].shape[0]
    pad1 = 3 if head_conv == 7 else 1
    bn_eps = 1e-5

    # ---- wrapper-side prep (pure JAX, fused by XLA) --------------------------
    x_nhwc = jnp.transpose(x_nchw, (0, 2, 3, 1))                     # NCHW -> NHWC
    p1, H1, W1 = _im2col(x_nhwc, head_conv, head_conv, stride=2, pad=pad1)
    K1 = head_conv * head_conv * 3
    K1p = ((K1 + 7) // 8) * 8                                        # 27 -> 32
    if K1p > K1:
        p1 = jnp.pad(p1, ((0, 0), (0, 0), (0, 0), (0, K1p - K1)))

    H2, W2 = H1 // 2, W1 // 2
    M2 = H2 * W2
    tok_k = 4 * K1p                                   # lanes per token (4 taps)

    # Pack `pack` consecutive tokens per 128-lane row (lane-dense in/out).
    pack = 128 // dim if (dim <= 128 and 128 % dim == 0) else 1
    while pack > 1 and M2 % pack:
        pack //= 2

    # conv1 patch rows, tap-major within each token's lane span, then `pack`
    # consecutive tokens packed along lanes:
    #   p1_pack[b, g, u*tok_k + (kh*2+kw)*K1p + k]
    #     = conv1 patch of conv1-output pixel (2*i2+kh, 2*j2+kw), token 4g+u.
    p1 = p1[:, :2 * H2, :2 * W2, :]
    p1_wide = (p1.reshape(B, H2, 2, W2, 2, K1p)
                 .transpose(0, 1, 3, 2, 4, 5)          # (B, i2, j2, kh, kw, K1p)
                 .reshape(B, M2, tok_k))
    p1_pack = p1_wide.reshape(B, M2 // pack, pack * tok_k).astype(jnp.bfloat16)

    # Fold BN (inference) into conv1 weight; build block-diagonal weights so the
    # kernel runs full-lane-width matmuls.
    w1_mat = _conv_weight_to_matmul(params["w1"])                     # (K1, dim)
    bn_scale = params["bn_gamma"] / jnp.sqrt(params["bn_var"] + bn_eps)
    bn_bias = params["bn_beta"] - params["bn_mean"] * bn_scale
    w1_folded = jnp.pad(w1_mat * bn_scale[None, :], ((0, K1p - K1), (0, 0)))
    w1_block = jnp.kron(jnp.eye(4, dtype=jnp.float32),
                        w1_folded).astype(jnp.bfloat16)               # (4*K1p, 4*dim)
    bnb_wide = jnp.tile(bn_bias, 4 * pack).reshape(1, 4 * pack * dim).astype(jnp.float32)

    w2_cat = _conv_weight_to_matmul(params["w2"])                     # (4*dim, dim)
    w2_big = jnp.kron(jnp.eye(pack, dtype=jnp.float32),
                      w2_cat).astype(jnp.bfloat16)                    # (pack*4*dim, pack*dim)
    b2_wide = jnp.tile(params["b2"], pack).reshape(1, pack * dim).astype(jnp.float32)
    g_wide = jnp.tile(params["ln_gamma"], pack).reshape(1, pack * dim).astype(jnp.float32)
    lb_wide = jnp.tile(params["ln_beta"], pack).reshape(1, pack * dim).astype(jnp.float32)
    # Block-ones matrix: per-token (32-lane group) sum broadcast back to the group.
    s_mat = jnp.kron(jnp.eye(pack, dtype=jnp.float32),
                     jnp.ones((dim, dim), jnp.float32))               # (pack*dim, pack*dim)

    # ---- tiling / grid --------------------------------------------------------
    RB = _pick_row_block(H2, W2, pack, target_tokens=4096)
    TILE_T = RB * W2
    TG = TILE_T // pack
    n_rb = H2 // RB
    G = M2 // pack
    Lin = pack * tok_k
    Lout = pack * dim
    # Note (v7x): grid = (B, n_rb); with B >= 2 (or n_rb >= 2) both TensorCores
    # get parallel work.

    kernel = partial(head_fused_kernel, pack, tok_k, dim)
    out_packed = pl.pallas_call(
        kernel,
        out_shape=jax.ShapeDtypeStruct((B, G, Lout), jnp.float32),
        grid=(B, n_rb),
        in_specs=[
            # patch stream: tiled over (batch, packed-token-row block)
            pl.BlockSpec((None, TG, Lin), lambda b, r: (b, r, 0)),
            # small parameters: same block every step -> stay VMEM-resident
            pl.BlockSpec((tok_k, 4 * dim), lambda b, r: (0, 0)),
            pl.BlockSpec((1, 4 * pack * dim), lambda b, r: (0, 0)),
            pl.BlockSpec((4 * pack * dim, Lout), lambda b, r: (0, 0)),
            pl.BlockSpec((1, Lout), lambda b, r: (0, 0)),
            pl.BlockSpec((Lout, Lout), lambda b, r: (0, 0)),
            pl.BlockSpec((1, Lout), lambda b, r: (0, 0)),
            pl.BlockSpec((1, Lout), lambda b, r: (0, 0)),
        ],
        out_specs=pl.BlockSpec((None, TG, Lout), lambda b, r: (b, r, 0)),
        compiler_params=pltpu.CompilerParams(
            dimension_semantics=("parallel", "parallel")),
    )(p1_pack, w1_block, bnb_wide, w2_big, b2_wide, s_mat, g_wide, lb_wide)

    # (B, M2//pack, pack*dim) and (B, M2, dim) are row-major identical bytes.
    tokens = out_packed.reshape(B, M2, dim)
    return tokens, H2, W2


# ---------------------------------------------------------------------------
# Pure-JAX f32 reference (for correctness check)
# ---------------------------------------------------------------------------

def head_reference(params, x_nchw, head_conv=3):
    B = x_nchw.shape[0]
    dim = params["w1"].shape[0]
    pad1 = 3 if head_conv == 7 else 1
    eps = 1e-5
    x = jnp.transpose(x_nchw, (0, 2, 3, 1))
    p1, H1, W1 = _im2col(x, head_conv, head_conv, 2, pad1)
    y1 = p1.reshape(B * H1 * W1, -1) @ _conv_weight_to_matmul(params["w1"])
    scale = params["bn_gamma"] / jnp.sqrt(params["bn_var"] + eps)
    y1 = y1 * scale + (params["bn_beta"] - params["bn_mean"] * scale)
    y1 = jnp.maximum(y1, 0.0).reshape(B, H1, W1, dim)
    p2, H2, W2 = _im2col(y1, 2, 2, 2, 0)
    z = p2.reshape(B * H2 * W2, -1) @ _conv_weight_to_matmul(params["w2"]) + params["b2"]
    mean = jnp.mean(z, axis=-1, keepdims=True)
    var = jnp.mean((z - mean) ** 2, axis=-1, keepdims=True)
    y = (z - mean) / jnp.sqrt(var + eps) * params["ln_gamma"] + params["ln_beta"]
    return y.reshape(B, H2 * W2, dim), H2, W2


# ---------------------------------------------------------------------------
# Main
# ---------------------------------------------------------------------------

if __name__ == "__main__":
    B, C_in, H_in, W_in = 2, 3, 16, 16   # Conv2d(3, dim, ...) fixes C_in = 3
    dim = 32
    head_conv = 3

    key = jax.random.PRNGKey(0)
    k_x, k_p = jax.random.split(key)
    x = jax.random.normal(k_x, (B, C_in, H_in, W_in), jnp.float32)
    params = init_head_params(k_p, dim, head_conv)

    tokens, H, W = head_forward(params, x, head_conv=head_conv)
    tokens = jax.block_until_ready(tokens)

    ref, Hr, Wr = head_reference(params, x, head_conv=head_conv)
    ref = jax.block_until_ready(ref)

    assert tokens.shape == (B, H * W, dim), tokens.shape
    assert (H, W) == (Hr, Wr) == (4, 4), (H, W, Hr, Wr)
    assert bool(jnp.all(jnp.isfinite(tokens)))
    err = float(jnp.max(jnp.abs(tokens - ref)))
    assert err < 0.2, f"max abs error vs f32 reference: {err}"
    print("KERNEL_OK")
</pallas_src>

<mosaic_0001>
module attributes {stable_mosaic.version = 11 : i64} {
  func.func @head_fused_kernel(%arg0: i32, %arg1: i32, %arg2: memref<1x4x512xbf16, #tpu.memory_space<vmem>>, %arg3: memref<128x128xbf16, #tpu.memory_space<vmem>>, %arg4: memref<1x512xf32, #tpu.memory_space<vmem>>, %arg5: memref<512x128xbf16, #tpu.memory_space<vmem>>, %arg6: memref<1x128xf32, #tpu.memory_space<vmem>>, %arg7: memref<128x128xf32, #tpu.memory_space<vmem>>, %arg8: memref<1x128xf32, #tpu.memory_space<vmem>>, %arg9: memref<1x128xf32, #tpu.memory_space<vmem>>, %arg10: memref<1x4x128xf32, #tpu.memory_space<vmem>>) attributes {dimension_semantics = [#tpu.dimension_semantics<parallel>, #tpu.dimension_semantics<parallel>], iteration_bounds = array<i64: 2, 1>, scalar_prefetch = 0 : i64, scratch_operands = 0 : i64, tpu.core_type = #tpu.core_type<tc>, window_params = [{transform_indices = @transform_0, window_bounds = array<i64: 1, 4, 512>}, {pipeline_mode = #tpu.pipeline_mode<synchronous>, transform_indices = @transform_1, window_bounds = array<i64: 128, 128>}, {pipeline_mode = #tpu.pipeline_mode<synchronous>, transform_indices = @transform_2, window_bounds = array<i64: 1, 512>}, {pipeline_mode = #tpu.pipeline_mode<synchronous>, transform_indices = @transform_3, window_bounds = array<i64: 512, 128>}, {pipeline_mode = #tpu.pipeline_mode<synchronous>, transform_indices = @transform_4, window_bounds = array<i64: 1, 128>}, {pipeline_mode = #tpu.pipeline_mode<synchronous>, transform_indices = @transform_5, window_bounds = array<i64: 128, 128>}, {pipeline_mode = #tpu.pipeline_mode<synchronous>, transform_indices = @transform_6, window_bounds = array<i64: 1, 128>}, {pipeline_mode = #tpu.pipeline_mode<synchronous>, transform_indices = @transform_7, window_bounds = array<i64: 1, 128>}, {transform_indices = @transform_8, window_bounds = array<i64: 1, 4, 128>}]} {
    %c0 = arith.constant 0 : index
    %c0_0 = arith.constant 0 : index
    %0 = vector.load %arg3[%c0, %c0_0] : memref<128x128xbf16, #tpu.memory_space<vmem>>, vector<128x128xbf16>
    %c0_1 = arith.constant 0 : index
    %c0_2 = arith.constant 0 : index
    %c0_3 = arith.constant 0 : index
    %1 = vector.load %arg2[%c0_1, %c0_2, %c0_3] : memref<1x4x512xbf16, #tpu.memory_space<vmem>>, vector<1x4x128xbf16>
    %2 = vector.shape_cast %1 : vector<1x4x128xbf16> to vector<4x128xbf16>
    %cst = arith.constant dense<0.000000e+00> : vector<4x128xf32>
    %3 = tpu.matmul %2, %0, %cst {dimension_numbers = #tpu.dot_dimension_numbers<[1], [0], [0], [1], [0, 0, 1, 1], [], []>} : vector<4x128xbf16>, vector<128x128xbf16>, vector<4x128xf32> -> vector<4x128xf32>
    %c0_4 = arith.constant 0 : index
    %c0_5 = arith.constant 0 : index
    %c128 = arith.constant 128 : index
    %4 = vector.load %arg2[%c0_4, %c0_5, %c128] : memref<1x4x512xbf16, #tpu.memory_space<vmem>>, vector<1x4x128xbf16>
    %5 = vector.shape_cast %4 : vector<1x4x128xbf16> to vector<4x128xbf16>
    %cst_6 = arith.constant dense<0.000000e+00> : vector<4x128xf32>
    %6 = tpu.matmul %5, %0, %cst_6 {dimension_numbers = #tpu.dot_dimension_numbers<[1], [0], [0], [1], [0, 0, 1, 1], [], []>} : vector<4x128xbf16>, vector<128x128xbf16>, vector<4x128xf32> -> vector<4x128xf32>
    %c0_7 = arith.constant 0 : index
    %c0_8 = arith.constant 0 : index
    %c256 = arith.constant 256 : index
    %7 = vector.load %arg2[%c0_7, %c0_8, %c256] : memref<1x4x512xbf16, #tpu.memory_space<vmem>>, vector<1x4x128xbf16>
    %8 = vector.shape_cast %7 : vector<1x4x128xbf16> to vector<4x128xbf16>
    %cst_9 = arith.constant dense<0.000000e+00> : vector<4x128xf32>
    %9 = tpu.matmul %8, %0, %cst_9 {dimension_numbers = #tpu.dot_dimension_numbers<[1], [0], [0], [1], [0, 0, 1, 1], [], []>} : vector<4x128xbf16>, vector<128x128xbf16>, vector<4x128xf32> -> vector<4x128xf32>
    %c0_10 = arith.constant 0 : index
    %c0_11 = arith.constant 0 : index
    %c384 = arith.constant 384 : index
    %10 = vector.load %arg2[%c0_10, %c0_11, %c384] : memref<1x4x512xbf16, #tpu.memory_space<vmem>>, vector<1x4x128xbf16>
    %11 = vector.shape_cast %10 : vector<1x4x128xbf16> to vector<4x128xbf16>
    %cst_12 = arith.constant dense<0.000000e+00> : vector<4x128xf32>
    %12 = tpu.matmul %11, %0, %cst_12 {dimension_numbers = #tpu.dot_dimension_numbers<[1], [0], [0], [1], [0, 0, 1, 1], [], []>} : vector<4x128xbf16>, vector<128x128xbf16>, vector<4x128xf32> -> vector<4x128xf32>
    %13 = tpu.concatenate %3, %6, %9, %12 in 1 : vector<4x128xf32>, vector<4x128xf32>, vector<4x128xf32>, vector<4x128xf32> -> vector<4x512xf32>
    %c0_13 = arith.constant 0 : index
    %c0_14 = arith.constant 0 : index
    %14 = vector.load %arg4[%c0_13, %c0_14] : memref<1x512xf32, #tpu.memory_space<vmem>>, vector<1x512xf32>
    %15 = vector.broadcast %14 : vector<1x512xf32> to vector<4x512xf32>
    %16 = arith.addf %13, %15 : vector<4x512xf32>
    %cst_15 = arith.constant 0.000000e+00 : f32
    %17 = vector.broadcast %cst_15 : f32 to vector<4x512xf32>
    %18 = arith.maximumf %16, %17 : vector<4x512xf32>
    %19 = arith.truncf %18 : vector<4x512xf32> to vector<4x512xbf16>
    %c0_16 = arith.constant 0 : index
    %c0_17 = arith.constant 0 : index
    %20 = vector.load %arg5[%c0_16, %c0_17] : memref<512x128xbf16, #tpu.memory_space<vmem>>, vector<512x128xbf16>
    %cst_18 = arith.constant dense<0.000000e+00> : vector<4x128xf32>
    %21 = tpu.matmul %19, %20, %cst_18 {dimension_numbers = #tpu.dot_dimension_numbers<[1], [0], [0], [1], [0, 0, 1, 1], [], []>} : vector<4x512xbf16>, vector<512x128xbf16>, vector<4x128xf32> -> vector<4x128xf32>
    %c0_19 = arith.constant 0 : index
    %c0_20 = arith.constant 0 : index
    %22 = vector.load %arg6[%c0_19, %c0_20] : memref<1x128xf32, #tpu.memory_space<vmem>>, vector<1x128xf32>
    %23 = vector.broadcast %22 : vector<1x128xf32> to vector<4x128xf32>
    %24 = arith.addf %21, %23 : vector<4x128xf32>
    %c0_21 = arith.constant 0 : index
    %c0_22 = arith.constant 0 : index
    %25 = vector.load %arg7[%c0_21, %c0_22] : memref<128x128xf32, #tpu.memory_space<vmem>>, vector<128x128xf32>
    %cst_23 = arith.constant dense<0.000000e+00> : vector<4x128xf32>
    %26 = tpu.matmul %24, %25, %cst_23 {dimension_numbers = #tpu.dot_dimension_numbers<[1], [0], [0], [1], [0, 0, 1, 1], [], []>} : vector<4x128xf32>, vector<128x128xf32>, vector<4x128xf32> -> vector<4x128xf32>
    %cst_24 = arith.constant 3.125000e-02 : f32
    %27 = vector.broadcast %cst_24 : f32 to vector<4x128xf32>
    %28 = arith.mulf %26, %27 : vector<4x128xf32>
    %29 = arith.subf %24, %28 : vector<4x128xf32>
    %30 = arith.mulf %29, %29 : vector<4x128xf32>
    %c0_25 = arith.constant 0 : index
    %c0_26 = arith.constant 0 : index
    %31 = vector.load %arg7[%c0_25, %c0_26] : memref<128x128xf32, #tpu.memory_space<vmem>>, vector<128x128xf32>
    %cst_27 = arith.constant dense<0.000000e+00> : vector<4x128xf32>
    %32 = tpu.matmul %30, %31, %cst_27 {dimension_numbers = #tpu.dot_dimension_numbers<[1], [0], [0], [1], [0, 0, 1, 1], [], []>} : vector<4x128xf32>, vector<128x128xf32>, vector<4x128xf32> -> vector<4x128xf32>
    %cst_28 = arith.constant 3.125000e-02 : f32
    %33 = vector.broadcast %cst_28 : f32 to vector<4x128xf32>
    %34 = arith.mulf %32, %33 : vector<4x128xf32>
    %cst_29 = arith.constant 9.99999974E-6 : f32
    %35 = vector.broadcast %cst_29 : f32 to vector<4x128xf32>
    %36 = arith.addf %34, %35 : vector<4x128xf32>
    %37 = math.rsqrt %36 : vector<4x128xf32>
    %38 = arith.mulf %29, %37 : vector<4x128xf32>
    %c0_30 = arith.constant 0 : index
    %c0_31 = arith.constant 0 : index
    %39 = vector.load %arg8[%c0_30, %c0_31] : memref<1x128xf32, #tpu.memory_space<vmem>>, vector<1x128xf32>
    %40 = vector.broadcast %39 : vector<1x128xf32> to vector<4x128xf32>
    %41 = arith.mulf %38, %40 : vector<4x128xf32>
    %c0_32 = arith.constant 0 : index
    %c0_33 = arith.constant 0 : index
    %42 = vector.load %arg9[%c0_32, %c0_33] : memref<1x128xf32, #tpu.memory_space<vmem>>, vector<1x128xf32>
    %43 = vector.broadcast %42 : vector<1x128xf32> to vector<4x128xf32>
    %44 = arith.addf %41, %43 : vector<4x128xf32>
    %c0_34 = arith.constant 0 : index
    %c0_35 = arith.constant 0 : index
    %c0_36 = arith.constant 0 : index
    %45 = vector.load %arg10[%c0_34, %c0_35, %c0_36] : memref<1x4x128xf32, #tpu.memory_space<vmem>>, vector<1x4x128xf32>
    %46 = vector.shape_cast %45 : vector<1x4x128xf32> to vector<4x128xf32>
    %47 = vector.shape_cast %44 : vector<4x128xf32> to vector<1x4x128xf32>
    tpu.vector_store %arg10[%c0_34, %c0_35, %c0_36], %47 {strides = array<i32>} : memref<1x4x128xf32, #tpu.memory_space<vmem>>, vector<1x4x128xf32>,
    return
  }
  func.func @transform_0(%arg0: i32, %arg1: i32) -> (i32, i32, i32) {
    %c0_i32 = arith.constant 0 : i32
    %c0_i32_0 = arith.constant 0 : i32
    return %arg0, %arg1, %c0_i32 : i32, i32, i32
  }
  func.func @transform_1(%arg0: i32, %arg1: i32) -> (i32, i32) {
    %c0_i32 = arith.constant 0 : i32
    %c0_i32_0 = arith.constant 0 : i32
    %c0_i32_1 = arith.constant 0 : i32
    return %c0_i32, %c0_i32_0 : i32, i32
  }
  func.func @transform_2(%arg0: i32, %arg1: i32) -> (i32, i32) {
    %c0_i32 = arith.constant 0 : i32
    %c0_i32_0 = arith.constant 0 : i32
    %c0_i32_1 = arith.constant 0 : i32
    return %c0_i32, %c0_i32_0 : i32, i32
  }
  func.func @transform_3(%arg0: i32, %arg1: i32) -> (i32, i32) {
    %c0_i32 = arith.constant 0 : i32
    %c0_i32_0 = arith.constant 0 : i32
    %c0_i32_1 = arith.constant 0 : i32
    return %c0_i32, %c0_i32_0 : i32, i32
  }
  func.func @transform_4(%arg0: i32, %arg1: i32) -> (i32, i32) {
    %c0_i32 = arith.constant 0 : i32
    %c0_i32_0 = arith.constant 0 : i32
    %c0_i32_1 = arith.constant 0 : i32
    return %c0_i32, %c0_i32_0 : i32, i32
  }
  func.func @transform_5(%arg0: i32, %arg1: i32) -> (i32, i32) {
    %c0_i32 = arith.constant 0 : i32
    %c0_i32_0 = arith.constant 0 : i32
    %c0_i32_1 = arith.constant 0 : i32
    return %c0_i32, %c0_i32_0 : i32, i32
  }
  func.func @transform_6(%arg0: i32, %arg1: i32) -> (i32, i32) {
    %c0_i32 = arith.constant 0 : i32
    %c0_i32_0 = arith.constant 0 : i32
    %c0_i32_1 = arith.constant 0 : i32
    return %c0_i32, %c0_i32_0 : i32, i32
  }
  func.func @transform_7(%arg0: i32, %arg1: i32) -> (i32, i32) {
    %c0_i32 = arith.constant 0 : i32
    %c0_i32_0 = arith.constant 0 : i32
    %c0_i32_1 = arith.constant 0 : i32
    return %c0_i32, %c0_i32_0 : i32, i32
  }
  func.func @transform_8(%arg0: i32, %arg1: i32) -> (i32, i32, i32) {
    %c0_i32 = arith.constant 0 : i32
    %c0_i32_0 = arith.constant 0 : i32
    return %arg0, %arg1, %c0_i32 : i32, i32, i32
  }
}

</mosaic_0001>

<llo_original>
// kernel: tpu_custom_call.1
$region0: #{tpu_custom_call.1}
  #allocation0 [shape = 'u32[]', space=smem, size = 0x4, offset = 0x4, fixed_abs, tag = 'smem constant byte address 0x4 - core index']
  #allocation1 [shape = 'u32[144,128]{1,0:T(1,128)}', space=vmem, size = 0x12000, scoped, tag = 'internal scratch']
  %s0 = inlined_call_operand.hbm [shape: bf16[2,4,512], index: 0, kind: input, shape index: {}]
  %s1 = inlined_call_operand.hbm [shape: bf16[128,128], index: 1, kind: input, shape index: {}]
  %s2 = inlined_call_operand.vmem [shape: f32[1,512], index: 2, kind: input, shape index: {}]
  %s3 = inlined_call_operand.hbm [shape: bf16[512,128], index: 3, kind: input, shape index: {}]
  %s4 = inlined_call_operand.vmem [shape: f32[1,128], index: 4, kind: input, shape index: {}]
  %s5 = inlined_call_operand.hbm [shape: f32[128,128], index: 5, kind: input, shape index: {}]
  %s6 = inlined_call_operand.vmem [shape: f32[1,128], index: 6, kind: input, shape index: {}]
  %s7 = inlined_call_operand.vmem [shape: f32[1,128], index: 7, kind: input, shape index: {}]
  %s8 = inlined_call_operand.hbm [shape: f32[2,4,128], index: 8, kind: output, shape index: {}]
  %s9 = sld [smem:[#allocation0]]
  $region81: #{tpu_custom_call.1} parent=0
    _
  %s11 = ssub.s32 1, %s9
  %s12 = scalar_select 0, %s11, %s9
  $region1: #{tpu_custom_call.1} parent=0
    #allocation2 [shape = 'u8[8192]{0}', space=vmem, size = 0x2000, scoped, tag = 'input window, operand 0']
    #allocation3 [shape = 's32[2]{0}', space=sflag, size = 0x8, scoped, tag = 'scoped memory for tpu_custom_call.1']
    #allocation4 [shape = 's32[2]{0}', space=sflag, size = 0x8, scoped, tag = 'scoped memory for tpu_custom_call.1']
    #allocation5 [shape = 'u8[32768]{0}', space=vmem, size = 0x8000, scoped, tag = 'input window, operand 1, single buffered']
    #allocation6 [shape = 's32[1]{0}', space=sflag, size = 0x4, scoped, tag = 'scoped memory for tpu_custom_call.1']
    #allocation7 [shape = 'u8[131072]{0}', space=vmem, size = 0x20000, scoped, tag = 'input window, operand 3, single buffered']
    #allocation8 [shape = 'u8[65536]{0}', space=vmem, size = 0x10000, scoped, tag = 'input window, operand 5, single buffered']
    #allocation9 [shape = 's32[1]{0}', space=sflag, size = 0x4, scoped, tag = 'scoped memory for tpu_custom_call.1']
    #allocation10 [shape = 'u8[4096]{0}', space=vmem, size = 0x1000, scoped, tag = 'output window, operand 0']
    %13 = vsyncpa [#allocation3], 0
    %s14 = scalar_lea.sflag [#allocation3], 1
    %15 = vsyncpa %s14, 0
    %16 = vsyncpa [#allocation6], 0
    %17 = vsyncpa [#allocation9], 0
    %18 = vsyncpa [#allocation4], 0
    %s19 = scalar_lea.sflag [#allocation4], 1
    %20 = vsyncpa %s19, 0
    loop: start=0, step=1, limit=4
    $region2: #{tpu_custom_call.1} parent=1 // loop_pre_header
      _
    $region3: #{tpu_custom_call.1} parent=1 // loop_header
      %s22 = sphi 0, %s26
      %p23 = scmp.ge.s32.totalorder %s22, 4
      %s29 = sphi 0, %s41
      %s30 = sphi 0, %s37
      %s31 = sphi 0, %s29
      %s32 = sphi 0, %s30
      %s33 = sphi 0, %s31
      %s34 = sphi 0, %s32
      %s46 = sphi 0, %s48
      %s49 = sphi 0, %s46
      %s50 = sphi 0, %s49
      %s66 = sphi 0, %s50
      %s70 = sphi 0, %s70
      %s72 = sphi 0, %s70
      %s73 = sphi 0, %s72
      %s87 = sphi 0, %s73
      %s91 = sphi 0, %s91
      %s93 = sphi 0, %s91
      %s94 = sphi 0, %s93
      %s108 = sphi 0, %s94
      %s112 = sphi 0, %s112
      %s114 = sphi 0, %s112
      %s115 = sphi 0, %s114
      %s129 = sphi 0, %s115
      %s133 = sphi 0, %s133
      %s135 = sphi 0, %s133
      %s136 = sphi 0, %s135
      %s150 = sphi 0, %s136
      %s154 = sphi 0, %s154
      %s156 = sphi 0, %s154
      %s157 = sphi 0, %s156
      %s171 = sphi 0, %s157
      %s175 = sphi 0, %s175
      %s177 = sphi 0, %s175
      %s178 = sphi 0, %s177
      %s192 = sphi 0, %s178
      %s196 = sphi 0, %s196
      %s198 = sphi 0, %s196
      %s199 = sphi 0, %s198
      %s213 = sphi 0, %s199
      %s221 = sphi 0, %s223
      %s224 = sphi 0, %s221
      %s225 = sphi 0, %s224
      %s241 = sphi 0, %s225
    $region4: #{tpu_custom_call.1} parent=1 // loop_header_branch
      %25 = sbr.rel (%p23) target = $region8
    $region5: #{tpu_custom_call.1} parent=1 // loop_body
      %s27 = ssub.s32 %s22, 1
      %s28 = ssub.s32 %s22, 2
      %s35 = sadd.s32 1, %s30
      %p36 = scmp.ge.s32.totalorder %s35, 1
      %s37 = scalar_select %p36, 0, %s35
      %s38 = sadd.s32 1, %s29
      %s39 = scalar_select %p36, %s38, %s29
      %p40 = scmp.ge.s32.totalorder %s39, 2
      %s41 = scalar_select %p40, 0, %s39
      %s42 = ssub.s32 %s29, %s41
      %s43 = ssub.s32 %s30, %s37
      %s44 = sor.u32 %s42, %s43
      %p45 = scmp.eq.s32.totalorder %s44, 0
      %s47 = sadd.s32 %s46, 1
      %s48 = scalar_select %p45, %s46, %s47
      %p51 = pneg %p45
      %p52 = scmp.eq.s32.totalorder %s22, 1
      %p53 = por %p51, %p52
      %p54 = scmp.ne.s32.totalorder %s46, %s49
      %p55 = scmp.eq.s32.totalorder %s22, 0
      %p56 = por %p54, %p55
      %p57 = scmp.ne.s32.totalorder %s46, %s49
      %p58 = scmp.eq.s32.totalorder %s27, 1
      %p59 = por %p57, %p58
      %p60 = scmp.ne.s32.totalorder %s49, %s50
      %p61 = scmp.eq.s32.totalorder %s27, 0
      %p62 = por %p60, %p61
      %p63 = scmp.ne.s32.totalorder %s49, %s50
      %p64 = scmp.eq.s32.totalorder %s28, 1
      %p65 = por %p63, %p64
      %p67 = scmp.ne.s32.totalorder %s50, %s66
      %p68 = scmp.eq.s32.totalorder %s28, 0
      %p69 = por %p67, %p68
      %s71 = sadd.s32 %s70, 1
      %p74 = scmp.eq.s32.totalorder %s22, 1
      %p75 = scmp.ne.s32.totalorder %s70, %s72
      %p76 = scmp.eq.s32.totalorder %s22, 0
      %p77 = por %p75, %p76
      %p78 = scmp.ne.s32.totalorder %s70, %s72
      %p79 = scmp.eq.s32.totalorder %s27, 1
      %p80 = por %p78, %p79
      %p81 = scmp.ne.s32.totalorder %s72, %s73
      %p82 = scmp.eq.s32.totalorder %s27, 0
      %p83 = por %p81, %p82
      %p84 = scmp.ne.s32.totalorder %s72, %s73
      %p85 = scmp.eq.s32.totalorder %s28, 1
      %p86 = por %p84, %p85
      %p88 = scmp.ne.s32.totalorder %s73, %s87
      %p89 = scmp.eq.s32.totalorder %s28, 0
      %p90 = por %p88, %p89
      %s92 = sadd.s32 %s91, 1
      %p95 = scmp.eq.s32.totalorder %s22, 1
      %p96 = scmp.ne.s32.totalorder %s91, %s93
      %p97 = scmp.eq.s32.totalorder %s22, 0
      %p98 = por %p96, %p97
      %p99 = scmp.ne.s32.totalorder %s91, %s93
      %p100 = scmp.eq.s32.totalorder %s27, 1
      %p101 = por %p99, %p100
      %p102 = scmp.ne.s32.totalorder %s93, %s94
      %p103 = scmp.eq.s32.totalorder %s27, 0
      %p104 = por %p102, %p103
      %p105 = scmp.ne.s32.totalorder %s93, %s94
      %p106 = scmp.eq.s32.totalorder %s28, 1
      %p107 = por %p105, %p106
      %p109 = scmp.ne.s32.totalorder %s94, %s108
      %p110 = scmp.eq.s32.totalorder %s28, 0
      %p111 = por %p109, %p110
      %s113 = sadd.s32 %s112, 1
      %p116 = scmp.eq.s32.totalorder %s22, 1
      %p117 = scmp.ne.s32.totalorder %s112, %s114
      %p118 = scmp.eq.s32.totalorder %s22, 0
      %p119 = por %p117, %p118
      %p120 = scmp.ne.s32.totalorder %s112, %s114
      %p121 = scmp.eq.s32.totalorder %s27, 1
      %p122 = por %p120, %p121
      %p123 = scmp.ne.s32.totalorder %s114, %s115
      %p124 = scmp.eq.s32.totalorder %s27, 0
      %p125 = por %p123, %p124
      %p126 = scmp.ne.s32.totalorder %s114, %s115
      %p127 = scmp.eq.s32.totalorder %s28, 1
      %p128 = por %p126, %p127
      %p130 = scmp.ne.s32.totalorder %s115, %s129
      %p131 = scmp.eq.s32.totalorder %s28, 0
      %p132 = por %p130, %p131
      %s134 = sadd.s32 %s133, 1
      %p137 = scmp.eq.s32.totalorder %s22, 1
      %p138 = scmp.ne.s32.totalorder %s133, %s135
      %p139 = scmp.eq.s32.totalorder %s22, 0
      %p140 = por %p138, %p139
      %p141 = scmp.ne.s32.totalorder %s133, %s135
      %p142 = scmp.eq.s32.totalorder %s27, 1
      %p143 = por %p141, %p142
      %p144 = scmp.ne.s32.totalorder %s135, %s136
      %p145 = scmp.eq.s32.totalorder %s27, 0
      %p146 = por %p144, %p145
      %p147 = scmp.ne.s32.totalorder %s135, %s136
      %p148 = scmp.eq.s32.totalorder %s28, 1
      %p149 = por %p147, %p148
      %p151 = scmp.ne.s32.totalorder %s136, %s150
      %p152 = scmp.eq.s32.totalorder %s28, 0
      %p153 = por %p151, %p152
      %s155 = sadd.s32 %s154, 1
      %p158 = scmp.eq.s32.totalorder %s22, 1
      %p159 = scmp.ne.s32.totalorder %s154, %s156
      %p160 = scmp.eq.s32.totalorder %s22, 0
      %p161 = por %p159, %p160
      %p162 = scmp.ne.s32.totalorder %s154, %s156
      %p163 = scmp.eq.s32.totalorder %s27, 1
      %p164 = por %p162, %p163
      %p165 = scmp.ne.s32.totalorder %s156, %s157
      %p166 = scmp.eq.s32.totalorder %s27, 0
      %p167 = por %p165, %p166
      %p168 = scmp.ne.s32.totalorder %s156, %s157
      %p169 = scmp.eq.s32.totalorder %s28, 1
      %p170 = por %p168, %p169
      %p172 = scmp.ne.s32.totalorder %s157, %s171
      %p173 = scmp.eq.s32.totalorder %s28, 0
      %p174 = por %p172, %p173
      %s176 = sadd.s32 %s175, 1
      %p179 = scmp.eq.s32.totalorder %s22, 1
      %p180 = scmp.ne.s32.totalorder %s175, %s177
      %p181 = scmp.eq.s32.totalorder %s22, 0
      %p182 = por %p180, %p181
      %p183 = scmp.ne.s32.totalorder %s175, %s177
      %p184 = scmp.eq.s32.totalorder %s27, 1
      %p185 = por %p183, %p184
      %p186 = scmp.ne.s32.totalorder %s177, %s178
      %p187 = scmp.eq.s32.totalorder %s27, 0
      %p188 = por %p186, %p187
      %p189 = scmp.ne.s32.totalorder %s177, %s178
      %p190 = scmp.eq.s32.totalorder %s28, 1
      %p191 = por %p189, %p190
      %p193 = scmp.ne.s32.totalorder %s178, %s192
      %p194 = scmp.eq.s32.totalorder %s28, 0
      %p195 = por %p193, %p194
      %s197 = sadd.s32 %s196, 1
      %p200 = scmp.eq.s32.totalorder %s22, 1
      %p201 = scmp.ne.s32.totalorder %s196, %s198
      %p202 = scmp.eq.s32.totalorder %s22, 0
      %p203 = por %p201, %p202
      %p204 = scmp.ne.s32.totalorder %s196, %s198
      %p205 = scmp.eq.s32.totalorder %s27, 1
      %p206 = por %p204, %p205
      %p207 = scmp.ne.s32.totalorder %s198, %s199
      %p208 = scmp.eq.s32.totalorder %s27, 0
      %p209 = por %p207, %p208
      %p210 = scmp.ne.s32.totalorder %s198, %s199
      %p211 = scmp.eq.s32.totalorder %s28, 1
      %p212 = por %p210, %p211
      %p214 = scmp.ne.s32.totalorder %s199, %s213
      %p215 = scmp.eq.s32.totalorder %s28, 0
      %p216 = por %p214, %p215
      %s217 = ssub.s32 %s29, %s41
      %s218 = ssub.s32 %s30, %s37
      %s219 = sor.u32 %s217, %s218
      %p220 = scmp.eq.s32.totalorder %s219, 0
      %s222 = sadd.s32 %s221, 1
      %s223 = scalar_select %p220, %s221, %s222
      %p226 = pneg %p220
      %p227 = scmp.eq.s32.totalorder %s22, 1
      %p228 = por %p226, %p227
      %p229 = scmp.ne.s32.totalorder %s221, %s224
      %p230 = scmp.eq.s32.totalorder %s22, 0
      %p231 = por %p229, %p230
      %p232 = scmp.ne.s32.totalorder %s221, %s224
      %p233 = scmp.eq.s32.totalorder %s27, 1
      %p234 = por %p232, %p233
      %p235 = scmp.ne.s32.totalorder %s224, %s225
      %p236 = scmp.eq.s32.totalorder %s27, 0
      %p237 = por %p235, %p236
      %p238 = scmp.ne.s32.totalorder %s224, %s225
      %p239 = scmp.eq.s32.totalorder %s28, 1
      %p240 = por %p238, %p239
      %p242 = scmp.ne.s32.totalorder %s225, %s241
      %p243 = scmp.eq.s32.totalorder %s28, 0
      %p244 = por %p242, %p243
      %p245 = scmp.le.s32.totalorder 1, %s22
      %p246 = scmp.lt.s32.totalorder %s22, 3
      %p247 = pnand %p245, %p246
      %p248 = pneg %p247
      // Predicated region
      $region9: #{tpu_custom_call.1} parent=5 // pred_check
        _
      $region10: #{tpu_custom_call.1} parent=5 // pred_check_branch
        %250 = sbr.rel (%p247) target = $region12
      $region11: #{tpu_custom_call.1} parent=5 // pred_region
        %s251 = ssub.s32 %s22, 1
        // Predicated region
        $region13: #{tpu_custom_call.1} parent=11 // pred_check
          %p252 = pneg %p83
        $region14: #{tpu_custom_call.1} parent=11 // pred_check_branch
          %254 = sbr.rel (%p252) target = $region16
        $region15: #{tpu_custom_call.1} parent=11 // pred_region
          %s256 = ssub.s32 1024, 1024
          %257 = vsyncadd [#allocation6], %s256
          %s258 = sshll.u32 [#allocation5], 4
          %s259 = int_to_ptr.vmem [resolvable:$true] %s258
          %264 = dma.hbm_to_vmem [thread:$0]  %s1, 1024, %s259, [#allocation6], 64, 64, 4
        $region16: #{tpu_custom_call.1} parent=11 // pred_fallthru
          _
        // Predicated region
        $region17: #{tpu_custom_call.1} parent=11 // pred_check
          %p265 = pneg %p104
        $region18: #{tpu_custom_call.1} parent=11 // pred_check_branch
          %267 = sbr.rel (%p265) target = $region20
        $region19: #{tpu_custom_call.1} parent=11 // pred_region
          _
        $region20: #{tpu_custom_call.1} parent=11 // pred_fallthru
          _
        // Predicated region
        $region21: #{tpu_custom_call.1} parent=11 // pred_check
          %p268 = pneg %p125
        $region22: #{tpu_custom_call.1} parent=11 // pred_check_branch
          %270 = sbr.rel (%p268) target = $region24
        $region23: #{tpu_custom_call.1} parent=11 // pred_region
          %s272 = ssub.s32 4096, 4096
          %273 = vsyncadd [#allocation6], %s272
          %s274 = sshll.u32 [#allocation7], 4
          %s275 = int_to_ptr.vmem [resolvable:$true] %s274
          %280 = dma.hbm_to_vmem [thread:$0]  %s3, 4096, %s275, [#allocation6], 64, 64, 4
        $region24: #{tpu_custom_call.1} parent=11 // pred_fallthru
          _
        // Predicated region
        $region25: #{tpu_custom_call.1} parent=11 // pred_check
          %p281 = pneg %p146
        $region26: #{tpu_custom_call.1} parent=11 // pred_check_branch
          %283 = sbr.rel (%p281) target = $region28
        $region27: #{tpu_custom_call.1} parent=11 // pred_region
          _
        $region28: #{tpu_custom_call.1} parent=11 // pred_fallthru
          _
        // Predicated region
        $region29: #{tpu_custom_call.1} parent=11 // pred_check
          %p284 = pneg %p167
        $region30: #{tpu_custom_call.1} parent=11 // pred_check_branch
          %286 = sbr.rel (%p284) target = $region32
        $region31: #{tpu_custom_call.1} parent=11 // pred_region
          %s288 = ssub.s32 2048, 2048
          %289 = vsyncadd [#allocation9], %s288
          %s290 = sshll.u32 [#allocation8], 4
          %s291 = int_to_ptr.vmem [resolvable:$true] %s290
          %296 = dma.hbm_to_vmem [thread:$0]  %s5, 2048, %s291, [#allocation9], 128, 128, 8
        $region32: #{tpu_custom_call.1} parent=11 // pred_fallthru
          _
        // Predicated region
        $region33: #{tpu_custom_call.1} parent=11 // pred_check
          %p297 = pneg %p188
        $region34: #{tpu_custom_call.1} parent=11 // pred_check_branch
          %299 = sbr.rel (%p297) target = $region36
        $region35: #{tpu_custom_call.1} parent=11 // pred_region
          _
        $region36: #{tpu_custom_call.1} parent=11 // pred_fallthru
          _
        // Predicated region
        $region37: #{tpu_custom_call.1} parent=11 // pred_check
          %p300 = pneg %p209
        $region38: #{tpu_custom_call.1} parent=11 // pred_check_branch
          %302 = sbr.rel (%p300) target = $region40
        $region39: #{tpu_custom_call.1} parent=11 // pred_region
          _
        $region40: #{tpu_custom_call.1} parent=11 // pred_fallthru
          _
      $region12: #{tpu_custom_call.1} parent=5 // pred_fallthru
        _
      %p303 = scmp.lt.s32.totalorder %s22, 2
      // Predicated region
      $region41: #{tpu_custom_call.1} parent=5 // pred_check
        %p304 = pneg %p303
      $region42: #{tpu_custom_call.1} parent=5 // pred_check_branch
        %306 = sbr.rel (%p304) target = $region44
      $region43: #{tpu_custom_call.1} parent=5 // pred_region
        // Predicated region
        $region45: #{tpu_custom_call.1} parent=43 // pred_check
          %p307 = pneg %p56
        $region46: #{tpu_custom_call.1} parent=43 // pred_check_branch
          %309 = sbr.rel (%p307) target = $region48
        $region47: #{tpu_custom_call.1} parent=43 // pred_region
          %s310 = sand.u32 %s46, 1
          %s311 = scalar_lea.sflag [#allocation3], %s310
          %s312 = sand.u32 %s46, 1
          %s313 = smul.addr %s312, 8
          %s314 = scalar_lea.vmem [#allocation2], %s313
          %s316 = ssub.s32 128, 128
          %317 = vsyncadd %s311, %s316
          %s318 = smul.addr %s30, 4
          %s319 = smul.addr %s29, 4
          %s320 = sadd.s32 %s318, %s319
          %s321 = smul.addr %s320, 32
          %s322 = scalar_lea.hbm %s0, %s321
          %s324 = sshll.u32 %s314, 4
          %s325 = int_to_ptr.vmem [resolvable:$true] %s324
          %327 = dma.hbm_to_vmem [thread:$0]  %s322, 128, %s325, %s311
        $region48: #{tpu_custom_call.1} parent=43 // pred_fallthru
          _
      $region44: #{tpu_custom_call.1} parent=5 // pred_fallthru
        _
      %p328 = scmp.le.s32.totalorder 1, %s22
      %p329 = scmp.lt.s32.totalorder %s22, 3
      %p330 = pnand %p328, %p329
      %p331 = pneg %p330
      // Predicated region
      $region49: #{tpu_custom_call.1} parent=5 // pred_check
        _
      $region50: #{tpu_custom_call.1} parent=5 // pred_check_branch
        %333 = sbr.rel (%p330) target = $region52
      $region51: #{tpu_custom_call.1} parent=5 // pred_region
        %s334 = ssub.s32 %s22, 1
        %s335 = sand.u32 %s49, 1
        %s336 = scalar_lea.sflag [#allocation3], %s335
        %s337 = sand.u32 %s49, 1
        %s338 = smul.addr %s337, 8
        %s339 = scalar_lea.vmem [#allocation2], %s338
        // Predicated region
        $region53: #{tpu_custom_call.1} parent=51 // pred_check
          %p340 = pneg %p62
        $region54: #{tpu_custom_call.1} parent=51 // pred_check_branch
          %342 = sbr.rel (%p340) target = $region56
        $region55: #{tpu_custom_call.1} parent=51 // pred_region
          %343 = dma.done %s336, 128
        $region56: #{tpu_custom_call.1} parent=51 // pred_fallthru
          _
        // Predicated region
        $region57: #{tpu_custom_call.1} parent=51 // pred_check
          %p344 = pneg %p83
        $region58: #{tpu_custom_call.1} parent=51 // pred_check_branch
          %346 = sbr.rel (%p344) target = $region60
        $region59: #{tpu_custom_call.1} parent=51 // pred_region
          %347 = dma.done [#allocation6], 1024
        $region60: #{tpu_custom_call.1} parent=51 // pred_fallthru
          _
        // Predicated region
        $region61: #{tpu_custom_call.1} parent=51 // pred_check
          %p348 = pneg %p125
        $region62: #{tpu_custom_call.1} parent=51 // pred_check_branch
          %350 = sbr.rel (%p348) target = $region64
        $region63: #{tpu_custom_call.1} parent=51 // pred_region
          %351 = dma.done [#allocation6], 4096
        $region64: #{tpu_custom_call.1} parent=51 // pred_fallthru
          _
        // Predicated region
        $region65: #{tpu_custom_call.1} parent=51 // pred_check
          %p352 = pneg %p167
        $region66: #{tpu_custom_call.1} parent=51 // pred_check_branch
          %354 = sbr.rel (%p352) target = $region68
        $region67: #{tpu_custom_call.1} parent=51 // pred_region
          %355 = dma.done [#allocation9], 2048
        $region68: #{tpu_custom_call.1} parent=51 // pred_fallthru
          _
        %s356 = sand.u32 %s49, 1
        %s357 = scalar_lea.sflag [#allocation3], %s356
        %s358 = sand.u32 %s49, 1
        %s359 = smul.addr %s358, 8
        %s360 = scalar_lea.vmem [#allocation2], %s359
        %p361 = pneg %p62
        %p362 = pneg %p59
        %p363 = pneg %p83
        %p364 = pneg %p80
        %p365 = pneg %p104
        %p366 = pneg %p101
        %p367 = pneg %p125
        %p368 = pneg %p122
        %p369 = pneg %p146
        %p370 = pneg %p143
        %p371 = pneg %p167
        %p372 = pneg %p164
        %p373 = pneg %p188
        %p374 = pneg %p185
        %p375 = pneg %p209
        %p376 = pneg %p206
        %p377 = pneg %p237
        %p378 = pneg %p234
        %s379 = sand.u32 %s224, 1
        %s380 = scalar_lea.sflag [#allocation4], %s379
        %s381 = sand.u32 %s224, 1
        %s382 = smul.addr %s381, 4
        %s383 = scalar_lea.vmem [#allocation10], %s382
        %v385 = vld [vmem:[#allocation5] sm:$0xf]
        %v386 = vld [vmem:[#allocation5 + $0x4] sm:$0xf]
        %v387 = vld [vmem:[#allocation5 + $0x8] sm:$0xf]
        %v388 = vld [vmem:[#allocation5 + $0xc] sm:$0xf]
        %v389 = vld [vmem:[#allocation5 + $0x10] sm:$0xf]
        %v390 = vld [vmem:[#allocation5 + $0x14] sm:$0xf]
        %v391 = vld [vmem:[#allocation5 + $0x18] sm:$0xf]
        %v392 = vld [vmem:[#allocation5 + $0x1c] sm:$0xf]
        %v393 = vld [vmem:[#allocation5 + $0x20] sm:$0xf]
        %v394 = vld [vmem:[#allocation5 + $0x24] sm:$0xf]
        %v395 = vld [vmem:[#allocation5 + $0x28] sm:$0xf]
        %v396 = vld [vmem:[#allocation5 + $0x2c] sm:$0xf]
        %v397 = vld [vmem:[#allocation5 + $0x30] sm:$0xf]
        %v398 = vld [vmem:[#allocation5 + $0x34] sm:$0xf]
        %v399 = vld [vmem:[#allocation5 + $0x38] sm:$0xf]
        %v400 = vld [vmem:[#allocation5 + $0x3c] sm:$0xf]
        %v401 = vld [vmem:[%s339] sm:$0x3]
        %v418 = vunpack.c.l.b16 %v385
        %v419 = vunpack.c.l.b16 %v386
        %v420 = vunpack.c.l.b16 %v387
        %v421 = vunpack.c.l.b16 %v388
        %v422 = vunpack.c.l.b16 %v389
        %v423 = vunpack.c.l.b16 %v390
        %v424 = vunpack.c.l.b16 %v391
        %v425 = vunpack.c.l.b16 %v392
        %v426 = vunpack.c.l.b16 %v393
        %v427 = vunpack.c.l.b16 %v394
        %v428 = vunpack.c.l.b16 %v395
        %v429 = vunpack.c.l.b16 %v396
        %v430 = vunpack.c.l.b16 %v397
        %v431 = vunpack.c.l.b16 %v398
        %v432 = vunpack.c.l.b16 %v399
        %v433 = vunpack.c.l.b16 %v400
        %v434 = vpack.c.b16 %v419, %v418
        %v435 = vpack.c.b16 %v421, %v420
        %v436 = vpack.c.b16 %v423, %v422
        %v437 = vpack.c.b16 %v425, %v424
        %v438 = vpack.c.b16 %v427, %v426
        %v439 = vpack.c.b16 %v429, %v428
        %v440 = vpack.c.b16 %v431, %v430
        %v441 = vpack.c.b16 %v433, %v432
        %450 = vmatprep.subr.bf16.mxu0 0
        %451 = vmatpush1.bf16.msra.mxu0 %v434
        %452 = vmatprep.subr.bf16.mxu0 0
        %453 = vmatpush1.bf16.msra.mxu0 %v435
        %454 = vmatprep.subr.bf16.mxu0 0
        %455 = vmatpush1.bf16.msra.mxu0 %v436
        %456 = vmatprep.subr.bf16.mxu0 0
        %457 = vmatpush1.bf16.msra.mxu0 %v437
        %458 = vmatprep.subr.bf16.mxu0 0
        %459 = vmatpush1.bf16.msra.mxu0 %v438
        %460 = vmatprep.subr.bf16.mxu0 0
        %461 = vmatpush1.bf16.msra.mxu0 %v439
        %462 = vmatprep.subr.bf16.mxu0 0
        %463 = vmatpush1.bf16.msra.mxu0 %v440
        %464 = vmatprep.subr.bf16.mxu0 0
        %465 = vmatpush1.bf16.msra.mxu0 %v441
        %466 = vmatprep.subr.bf16.mxu0 0
        %467 = vmatpush1.bf16.msra.mxu0 0
        %468 = vmatprep.subr.bf16.mxu0 0
        %469 = vmatpush1.bf16.msra.mxu0 0
        %470 = vmatprep.subr.bf16.mxu0 0
        %471 = vmatpush1.bf16.msra.mxu0 0
        %472 = vmatprep.subr.bf16.mxu0 0
        %473 = vmatpush1.bf16.msra.mxu0 0
        %474 = vmatprep.subr.bf16.mxu0 0
        %475 = vmatpush1.bf16.msra.mxu0 0
        %476 = vmatprep.subr.bf16.mxu0 0
        %477 = vmatpush1.bf16.msra.mxu0 0
        %478 = vmatprep.subr.bf16.mxu0 0
        %479 = vmatpush1.bf16.msra.mxu0 0
        %480 = vmatprep.subr.bf16.mxu0 0
        %481 = vmatpush1.bf16.msra.mxu0 0
        %482 = vmatprep.mubr.bf16.mxu0 0
        %483 = vmatmul.mubr.bf16.gmra.mrb[0].mxu0 %v401
        %v484 = vpop.f32.mrb[0].mxu0
        %v485 = vadd.f32 0.0, %v484
        %v486 = vpop.f32.mrb[0].mxu0
        %v487 = vpop.f32.mrb[0].mxu0
        %v488 = vpop.f32.mrb[0].mxu0
        %489 = vdwg.mxu0
        %v490 = vld [vmem:[%s339 + $0x2] sm:$0x3]
        %491 = vmatprep.subr.bf16.mxu0 0
        %492 = vmatpush1.bf16.msra.mxu0 %v434
        %493 = vmatprep.subr.bf16.mxu0 0
        %494 = vmatpush1.bf16.msra.mxu0 %v435
        %495 = vmatprep.subr.bf16.mxu0 0
        %496 = vmatpush1.bf16.msra.mxu0 %v436
        %497 = vmatprep.subr.bf16.mxu0 0
        %498 = vmatpush1.bf16.msra.mxu0 %v437
        %499 = vmatprep.subr.bf16.mxu0 0
        %500 = vmatpush1.bf16.msra.mxu0 %v438
        %501 = vmatprep.subr.bf16.mxu0 0
        %502 = vmatpush1.bf16.msra.mxu0 %v439
        %503 = vmatprep.subr.bf16.mxu0 0
        %504 = vmatpush1.bf16.msra.mxu0 %v440
        %505 = vmatprep.subr.bf16.mxu0 0
        %506 = vmatpush1.bf16.msra.mxu0 %v441
        %507 = vmatprep.subr.bf16.mxu0 0
        %508 = vmatpush1.bf16.msra.mxu0 0
        %509 = vmatprep.subr.bf16.mxu0 0
        %510 = vmatpush1.bf16.msra.mxu0 0
        %511 = vmatprep.subr.bf16.mxu0 0
        %512 = vmatpush1.bf16.msra.mxu0 0
        %513 = vmatprep.subr.bf16.mxu0 0
        %514 = vmatpush1.bf16.msra.mxu0 0
        %515 = vmatprep.subr.bf16.mxu0 0
        %516 = vmatpush1.bf16.msra.mxu0 0
        %517 = vmatprep.subr.bf16.mxu0 0
        %518 = vmatpush1.bf16.msra.mxu0 0
        %519 = vmatprep.subr.bf16.mxu0 0
        %520 = vmatpush1.bf16.msra.mxu0 0
        %521 = vmatprep.subr.bf16.mxu0 0
        %522 = vmatpush1.bf16.msra.mxu0 0
        %523 = vmatprep.mubr.bf16.mxu0 0
        %524 = vmatmul.mubr.bf16.gmra.mrb[0].mxu0 %v490
        %v525 = vpop.f32.mrb[0].mxu0
        %v526 = vadd.f32 0.0, %v525
        %v527 = vpop.f32.mrb[0].mxu0
        %v528 = vpop.f32.mrb[0].mxu0
        %v529 = vpop.f32.mrb[0].mxu0
        %530 = vdwg.mxu0
        %v531 = vld [vmem:[%s339 + $0x4] sm:$0x3]
        %532 = vmatprep.subr.bf16.mxu0 0
        %533 = vmatpush1.bf16.msra.mxu0 %v434
        %534 = vmatprep.subr.bf16.mxu0 0
        %535 = vmatpush1.bf16.msra.mxu0 %v435
        %536 = vmatprep.subr.bf16.mxu0 0
        %537 = vmatpush1.bf16.msra.mxu0 %v436
        %538 = vmatprep.subr.bf16.mxu0 0
        %539 = vmatpush1.bf16.msra.mxu0 %v437
        %540 = vmatprep.subr.bf16.mxu0 0
        %541 = vmatpush1.bf16.msra.mxu0 %v438
        %542 = vmatprep.subr.bf16.mxu0 0
        %543 = vmatpush1.bf16.msra.mxu0 %v439
        %544 = vmatprep.subr.bf16.mxu0 0
        %545 = vmatpush1.bf16.msra.mxu0 %v440
        %546 = vmatprep.subr.bf16.mxu0 0
        %547 = vmatpush1.bf16.msra.mxu0 %v441
        %548 = vmatprep.subr.bf16.mxu0 0
        %549 = vmatpush1.bf16.msra.mxu0 0
        %550 = vmatprep.subr.bf16.mxu0 0
        %551 = vmatpush1.bf16.msra.mxu0 0
        %552 = vmatprep.subr.bf16.mxu0 0
        %553 = vmatpush1.bf16.msra.mxu0 0
        %554 = vmatprep.subr.bf16.mxu0 0
        %555 = vmatpush1.bf16.msra.mxu0 0
        %556 = vmatprep.subr.bf16.mxu0 0
        %557 = vmatpush1.bf16.msra.mxu0 0
        %558 = vmatprep.subr.bf16.mxu0 0
        %559 = vmatpush1.bf16.msra.mxu0 0
        %560 = vmatprep.subr.bf16.mxu0 0
        %561 = vmatpush1.bf16.msra.mxu0 0
        %562 = vmatprep.subr.bf16.mxu0 0
        %563 = vmatpush1.bf16.msra.mxu0 0
        %564 = vmatprep.mubr.bf16.mxu0 0
        %565 = vmatmul.mubr.bf16.gmra.mrb[0].mxu0 %v531
        %v566 = vpop.f32.mrb[0].mxu0
        %v567 = vadd.f32 0.0, %v566
        %v568 = vpop.f32.mrb[0].mxu0
        %v569 = vpop.f32.mrb[0].mxu0
        %v570 = vpop.f32.mrb[0].mxu0
        %571 = vdwg.mxu0
        %v572 = vld [vmem:[%s339 + $0x6] sm:$0x3]
        %573 = vmatprep.subr.bf16.mxu0 0
        %574 = vmatpush1.bf16.msra.mxu0 %v434
        %575 = vmatprep.subr.bf16.mxu0 0
        %576 = vmatpush1.bf16.msra.mxu0 %v435
        %577 = vmatprep.subr.bf16.mxu0 0
        %578 = vmatpush1.bf16.msra.mxu0 %v436
        %579 = vmatprep.subr.bf16.mxu0 0
        %580 = vmatpush1.bf16.msra.mxu0 %v437
        %581 = vmatprep.subr.bf16.mxu0 0
        %582 = vmatpush1.bf16.msra.mxu0 %v438
        %583 = vmatprep.subr.bf16.mxu0 0
        %584 = vmatpush1.bf16.msra.mxu0 %v439
        %585 = vmatprep.subr.bf16.mxu0 0
        %586 = vmatpush1.bf16.msra.mxu0 %v440
        %587 = vmatprep.subr.bf16.mxu0 0
        %588 = vmatpush1.bf16.msra.mxu0 %v441
        %589 = vmatprep.subr.bf16.mxu0 0
        %590 = vmatpush1.bf16.msra.mxu0 0
        %591 = vmatprep.subr.bf16.mxu0 0
        %592 = vmatpush1.bf16.msra.mxu0 0
        %593 = vmatprep.subr.bf16.mxu0 0
        %594 = vmatpush1.bf16.msra.mxu0 0
        %595 = vmatprep.subr.bf16.mxu0 0
        %596 = vmatpush1.bf16.msra.mxu0 0
        %597 = vmatprep.subr.bf16.mxu0 0
        %598 = vmatpush1.bf16.msra.mxu0 0
        %599 = vmatprep.subr.bf16.mxu0 0
        %600 = vmatpush1.bf16.msra.mxu0 0
        %601 = vmatprep.subr.bf16.mxu0 0
        %602 = vmatpush1.bf16.msra.mxu0 0
        %603 = vmatprep.subr.bf16.mxu0 0
        %604 = vmatpush1.bf16.msra.mxu0 0
        %605 = vmatprep.mubr.bf16.mxu0 0
        %606 = vmatmul.mubr.bf16.gmra.mrb[0].mxu0 %v572
        %v607 = vpop.f32.mrb[0].mxu0
        %v608 = vadd.f32 0.0, %v607
        %v609 = vpop.f32.mrb[0].mxu0
        %v610 = vpop.f32.mrb[0].mxu0
        %v611 = vpop.f32.mrb[0].mxu0
        %612 = vdwg.mxu0
        %v613 = vld [vmem:[%s2] sm:$0xf]
        %v615 = vlaneseq
        %v616 = vshrl.u32 %v615, 7
        %v617 = vsub.s32 0, %v616
        %v618 = vrot.slane %v613, %v617
        %v619 = vlaneseq
        %v620 = vshrl.u32 %v619, 7
        %v621 = vsub.s32 1, %v620
        %v622 = vrot.slane %v613, %v621
        %v623 = vlaneseq
        %v624 = vshrl.u32 %v623, 7
        %v625 = vsub.s32 2, %v624
        %v626 = vrot.slane %v613, %v625
        %v627 = vlaneseq
        %v628 = vshrl.u32 %v627, 7
        %v629 = vsub.s32 3, %v628
        %v630 = vrot.slane %v613, %v629
        %v635 = vadd.f32 %v485, %v618
        %v636 = vadd.f32 %v526, %v622
        %v637 = vadd.f32 %v567, %v626
        %v638 = vadd.f32 %v608, %v630
        %v639 = vmax.f32 %v635, 0.0
        %v640 = vmax.f32 %v636, 0.0
        %v641 = vmax.f32 %v637, 0.0
        %v642 = vmax.f32 %v638, 0.0
        %v643 = vpack.c.bf16 %v639, %v639
        %v644 = vpack.c.bf16 %v640, %v640
        %v645 = vpack.c.bf16 %v641, %v641
        %v646 = vpack.c.bf16 %v642, %v642
        %v647 = vld [vmem:[#allocation7] sm:$0xf]
        %v648 = vld [vmem:[#allocation7 + $0x4] sm:$0xf]
        %v649 = vld [vmem:[#allocation7 + $0x8] sm:$0xf]
        %v650 = vld [vmem:[#allocation7 + $0xc] sm:$0xf]
        %v651 = vld [vmem:[#allocation7 + $0x10] sm:$0xf]
        %v652 = vld [vmem:[#allocation7 + $0x14] sm:$0xf]
        %v653 = vld [vmem:[#allocation7 + $0x18] sm:$0xf]
        %v654 = vld [vmem:[#allocation7 + $0x1c] sm:$0xf]
        %v655 = vld [vmem:[#allocation7 + $0x20] sm:$0xf]
        %v656 = vld [vmem:[#allocation7 + $0x24] sm:$0xf]
        %v657 = vld [vmem:[#allocation7 + $0x28] sm:$0xf]
        %v658 = vld [vmem:[#allocation7 + $0x2c] sm:$0xf]
        %v659 = vld [vmem:[#allocation7 + $0x30] sm:$0xf]
        %v660 = vld [vmem:[#allocation7 + $0x34] sm:$0xf]
        %v661 = vld [vmem:[#allocation7 + $0x38] sm:$0xf]
        %v662 = vld [vmem:[#allocation7 + $0x3c] sm:$0xf]
        %v663 = vld [vmem:[#allocation7 + $0x40] sm:$0xf]
        %v664 = vld [vmem:[#allocation7 + $0x44] sm:$0xf]
        %v665 = vld [vmem:[#allocation7 + $0x48] sm:$0xf]
        %v666 = vld [vmem:[#allocation7 + $0x4c] sm:$0xf]
        %v667 = vld [vmem:[#allocation7 + $0x50] sm:$0xf]
        %v668 = vld [vmem:[#allocation7 + $0x54] sm:$0xf]
        %v669 = vld [vmem:[#allocation7 + $0x58] sm:$0xf]
        %v670 = vld [vmem:[#allocation7 + $0x5c] sm:$0xf]
        %v671 = vld [vmem:[#allocation7 + $0x60] sm:$0xf]
        %v672 = vld [vmem:[#allocation7 + $0x64] sm:$0xf]
        %v673 = vld [vmem:[#allocation7 + $0x68] sm:$0xf]
        %v674 = vld [vmem:[#allocation7 + $0x6c] sm:$0xf]
        %v675 = vld [vmem:[#allocation7 + $0x70] sm:$0xf]
        %v676 = vld [vmem:[#allocation7 + $0x74] sm:$0xf]
        %v677 = vld [vmem:[#allocation7 + $0x78] sm:$0xf]
        %v678 = vld [vmem:[#allocation7 + $0x7c] sm:$0xf]
        %v679 = vld [vmem:[#allocation7 + $0x80] sm:$0xf]
        %v680 = vld [vmem:[#allocation7 + $0x84] sm:$0xf]
        %v681 = vld [vmem:[#allocation7 + $0x88] sm:$0xf]
        %v682 = vld [vmem:[#allocation7 + $0x8c] sm:$0xf]
        %v683 = vld [vmem:[#allocation7 + $0x90] sm:$0xf]
        %v684 = vld [vmem:[#allocation7 + $0x94] sm:$0xf]
        %v685 = vld [vmem:[#allocation7 + $0x98] sm:$0xf]
        %v686 = vld [vmem:[#allocation7 + $0x9c] sm:$0xf]
        %v687 = vld [vmem:[#allocation7 + $0xa0] sm:$0xf]
        %v688 = vld [vmem:[#allocation7 + $0xa4] sm:$0xf]
        %v689 = vld [vmem:[#allocation7 + $0xa8] sm:$0xf]
        %v690 = vld [vmem:[#allocation7 + $0xac] sm:$0xf]
        %v691 = vld [vmem:[#allocation7 + $0xb0] sm:$0xf]
        %v692 = vld [vmem:[#allocation7 + $0xb4] sm:$0xf]
        %v693 = vld [vmem:[#allocation7 + $0xb8] sm:$0xf]
        %v694 = vld [vmem:[#allocation7 + $0xbc] sm:$0xf]
        %v695 = vld [vmem:[#allocation7 + $0xc0] sm:$0xf]
        %v696 = vld [vmem:[#allocation7 + $0xc4] sm:$0xf]
        %v697 = vld [vmem:[#allocation7 + $0xc8] sm:$0xf]
        %v698 = vld [vmem:[#allocation7 + $0xcc] sm:$0xf]
        %v699 = vld [vmem:[#allocation7 + $0xd0] sm:$0xf]
        %v700 = vld [vmem:[#allocation7 + $0xd4] sm:$0xf]
        %v701 = vld [vmem:[#allocation7 + $0xd8] sm:$0xf]
        %v702 = vld [vmem:[#allocation7 + $0xdc] sm:$0xf]
        %v703 = vld [vmem:[#allocation7 + $0xe0] sm:$0xf]
        %v704 = vld [vmem:[#allocation7 + $0xe4] sm:$0xf]
        %v705 = vld [vmem:[#allocation7 + $0xe8] sm:$0xf]
        %v706 = vld [vmem:[#allocation7 + $0xec] sm:$0xf]
        %v707 = vld [vmem:[#allocation7 + $0xf0] sm:$0xf]
        %v708 = vld [vmem:[#allocation7 + $0xf4] sm:$0xf]
        %v709 = vld [vmem:[#allocation7 + $0xf8] sm:$0xf]
        %v710 = vld [vmem:[#allocation7 + $0xfc] sm:$0xf]
        %v711 = vld [vmem:[%s4] sm:$0x1]
        %v713 = vlaneseq
        %v714 = vshrl.u32 %v713, 7
        %v715 = vsub.s32 0, %v714
        %v716 = vrot.slane %v711, %v715
        %v782 = vunpack.c.l.b16 %v647
        %v783 = vunpack.c.l.b16 %v648
        %v784 = vunpack.c.l.b16 %v649
        %v785 = vunpack.c.l.b16 %v650
        %v786 = vunpack.c.l.b16 %v651
        %v787 = vunpack.c.l.b16 %v652
        %v788 = vunpack.c.l.b16 %v653
        %v789 = vunpack.c.l.b16 %v654
        %v790 = vunpack.c.l.b16 %v655
        %v791 = vunpack.c.l.b16 %v656
        %v792 = vunpack.c.l.b16 %v657
        %v793 = vunpack.c.l.b16 %v658
        %v794 = vunpack.c.l.b16 %v659
        %v795 = vunpack.c.l.b16 %v660
        %v796 = vunpack.c.l.b16 %v661
        %v797 = vunpack.c.l.b16 %v662
        %v798 = vunpack.c.l.b16 %v663
        %v799 = vunpack.c.l.b16 %v664
        %v800 = vunpack.c.l.b16 %v665
        %v801 = vunpack.c.l.b16 %v666
        %v802 = vunpack.c.l.b16 %v667
        %v803 = vunpack.c.l.b16 %v668
        %v804 = vunpack.c.l.b16 %v669
        %v805 = vunpack.c.l.b16 %v670
        %v806 = vunpack.c.l.b16 %v671
        %v807 = vunpack.c.l.b16 %v672
        %v808 = vunpack.c.l.b16 %v673
        %v809 = vunpack.c.l.b16 %v674
        %v810 = vunpack.c.l.b16 %v675
        %v811 = vunpack.c.l.b16 %v676
        %v812 = vunpack.c.l.b16 %v677
        %v813 = vunpack.c.l.b16 %v678
        %v814 = vunpack.c.l.b16 %v679
        %v815 = vunpack.c.l.b16 %v680
        %v816 = vunpack.c.l.b16 %v681
        %v817 = vunpack.c.l.b16 %v682
        %v818 = vunpack.c.l.b16 %v683
        %v819 = vunpack.c.l.b16 %v684
        %v820 = vunpack.c.l.b16 %v685
        %v821 = vunpack.c.l.b16 %v686
        %v822 = vunpack.c.l.b16 %v687
        %v823 = vunpack.c.l.b16 %v688
        %v824 = vunpack.c.l.b16 %v689
        %v825 = vunpack.c.l.b16 %v690
        %v826 = vunpack.c.l.b16 %v691
        %v827 = vunpack.c.l.b16 %v692
        %v828 = vunpack.c.l.b16 %v693
        %v829 = vunpack.c.l.b16 %v694
        %v830 = vunpack.c.l.b16 %v695
        %v831 = vunpack.c.l.b16 %v696
        %v832 = vunpack.c.l.b16 %v697
        %v833 = vunpack.c.l.b16 %v698
        %v834 = vunpack.c.l.b16 %v699
        %v835 = vunpack.c.l.b16 %v700
        %v836 = vunpack.c.l.b16 %v701
        %v837 = vunpack.c.l.b16 %v702
        %v838 = vunpack.c.l.b16 %v703
        %v839 = vunpack.c.l.b16 %v704
        %v840 = vunpack.c.l.b16 %v705
        %v841 = vunpack.c.l.b16 %v706
        %v842 = vunpack.c.l.b16 %v707
        %v843 = vunpack.c.l.b16 %v708
        %v844 = vunpack.c.l.b16 %v709
        %v845 = vunpack.c.l.b16 %v710
        %v846 = vpack.c.b16 %v783, %v782
        %v847 = vpack.c.b16 %v785, %v784
        %v848 = vpack.c.b16 %v787, %v786
        %v849 = vpack.c.b16 %v789, %v788
        %v850 = vpack.c.b16 %v791, %v790
        %v851 = vpack.c.b16 %v793, %v792
        %v852 = vpack.c.b16 %v795, %v794
        %v853 = vpack.c.b16 %v797, %v796
        %v854 = vpack.c.b16 %v799, %v798
        %v855 = vpack.c.b16 %v801, %v800
        %v856 = vpack.c.b16 %v803, %v802
        %v857 = vpack.c.b16 %v805, %v804
        %v858 = vpack.c.b16 %v807, %v806
        %v859 = vpack.c.b16 %v809, %v808
        %v860 = vpack.c.b16 %v811, %v810
        %v861 = vpack.c.b16 %v813, %v812
        %v862 = vpack.c.b16 %v815, %v814
        %v863 = vpack.c.b16 %v817, %v816
        %v864 = vpack.c.b16 %v819, %v818
        %v865 = vpack.c.b16 %v821, %v820
        %v866 = vpack.c.b16 %v823, %v822
        %v867 = vpack.c.b16 %v825, %v824
        %v868 = vpack.c.b16 %v827, %v826
        %v869 = vpack.c.b16 %v829, %v828
        %v870 = vpack.c.b16 %v831, %v830
        %v871 = vpack.c.b16 %v833, %v832
        %v872 = vpack.c.b16 %v835, %v834
        %v873 = vpack.c.b16 %v837, %v836
        %v874 = vpack.c.b16 %v839, %v838
        %v875 = vpack.c.b16 %v841, %v840
        %v876 = vpack.c.b16 %v843, %v842
        %v877 = vpack.c.b16 %v845, %v844
        %910 = vmatprep.subr.bf16.mxu0 0
        %911 = vmatpush1.bf16.msra.mxu0 %v846
        %912 = vmatprep.subr.bf16.mxu0 0
        %913 = vmatpush1.bf16.msra.mxu0 %v847
        %914 = vmatprep.subr.bf16.mxu0 0
        %915 = vmatpush1.bf16.msra.mxu0 %v848
        %916 = vmatprep.subr.bf16.mxu0 0
        %917 = vmatpush1.bf16.msra.mxu0 %v849
        %918 = vmatprep.subr.bf16.mxu0 0
        %919 = vmatpush1.bf16.msra.mxu0 %v850
        %920 = vmatprep.subr.bf16.mxu0 0
        %921 = vmatpush1.bf16.msra.mxu0 %v851
        %922 = vmatprep.subr.bf16.mxu0 0
        %923 = vmatpush1.bf16.msra.mxu0 %v852
        %924 = vmatprep.subr.bf16.mxu0 0
        %925 = vmatpush1.bf16.msra.mxu0 %v853
        %926 = vmatprep.subr.bf16.mxu0 0
        %927 = vmatpush1.bf16.msra.mxu0 %v854
        %928 = vmatprep.subr.bf16.mxu0 0
        %929 = vmatpush1.bf16.msra.mxu0 %v855
        %930 = vmatprep.subr.bf16.mxu0 0
        %931 = vmatpush1.bf16.msra.mxu0 %v856
        %932 = vmatprep.subr.bf16.mxu0 0
        %933 = vmatpush1.bf16.msra.mxu0 %v857
        %934 = vmatprep.subr.bf16.mxu0 0
        %935 = vmatpush1.bf16.msra.mxu0 %v858
        %936 = vmatprep.subr.bf16.mxu0 0
        %937 = vmatpush1.bf16.msra.mxu0 %v859
        %938 = vmatprep.subr.bf16.mxu0 0
        %939 = vmatpush1.bf16.msra.mxu0 %v860
        %940 = vmatprep.subr.bf16.mxu0 0
        %941 = vmatpush1.bf16.msra.mxu0 %v861
        %942 = vmatprep.mubr.bf16.mxu0 %v644
        %943 = vmatmul.mubr.bf16.gmra.mrb[0].mxu0 %v643
        %v944 = vpop.f32.mrb[0].mxu0
        %v945 = vadd.f32 %v716, %v944
        %v946 = vpop.f32.mrb[0].mxu0
        %v947 = vpop.f32.mrb[0].mxu0
        %v948 = vpop.f32.mrb[0].mxu0
        %949 = vdwg.mxu0
        %950 = vmatprep.subr.bf16.mxu0 0
        %951 = vmatpush1.bf16.msra.mxu0 %v862
        %952 = vmatprep.subr.bf16.mxu0 0
        %953 = vmatpush1.bf16.msra.mxu0 %v863
        %954 = vmatprep.subr.bf16.mxu0 0
        %955 = vmatpush1.bf16.msra.mxu0 %v864
        %956 = vmatprep.subr.bf16.mxu0 0
        %957 = vmatpush1.bf16.msra.mxu0 %v865
        %958 = vmatprep.subr.bf16.mxu0 0
        %959 = vmatpush1.bf16.msra.mxu0 %v866
        %960 = vmatprep.subr.bf16.mxu0 0
        %961 = vmatpush1.bf16.msra.mxu0 %v867
        %962 = vmatprep.subr.bf16.mxu0 0
        %963 = vmatpush1.bf16.msra.mxu0 %v868
        %964 = vmatprep.subr.bf16.mxu0 0
        %965 = vmatpush1.bf16.msra.mxu0 %v869
        %966 = vmatprep.subr.bf16.mxu0 0
        %967 = vmatpush1.bf16.msra.mxu0 %v870
        %968 = vmatprep.subr.bf16.mxu0 0
        %969 = vmatpush1.bf16.msra.mxu0 %v871
        %970 = vmatprep.subr.bf16.mxu0 0
        %971 = vmatpush1.bf16.msra.mxu0 %v872
        %972 = vmatprep.subr.bf16.mxu0 0
        %973 = vmatpush1.bf16.msra.mxu0 %v873
        %974 = vmatprep.subr.bf16.mxu0 0
        %975 = vmatpush1.bf16.msra.mxu0 %v874
        %976 = vmatprep.subr.bf16.mxu0 0
        %977 = vmatpush1.bf16.msra.mxu0 %v875
        %978 = vmatprep.subr.bf16.mxu0 0
        %979 = vmatpush1.bf16.msra.mxu0 %v876
        %980 = vmatprep.subr.bf16.mxu0 0
        %981 = vmatpush1.bf16.msra.mxu0 %v877
        %982 = vmatprep.mubr.bf16.mxu0 %v646
        %983 = vmatmul.mubr.bf16.gmra.mrb[0].mxu0 %v645
        %v984 = vpop.f32.mrb[0].mxu0
        %v985 = vadd.f32 %v945, %v984
        %v986 = vpop.f32.mrb[0].mxu0
        %v987 = vpop.f32.mrb[0].mxu0
        %v988 = vpop.f32.mrb[0].mxu0
        %989 = vdwg.mxu0
        %v990 = vld [vmem:[#allocation8] sm:$0xff]
        %v991 = vld [vmem:[#allocation8 + $0x8] sm:$0xff]
        %v992 = vld [vmem:[#allocation8 + $0x10] sm:$0xff]
        %v993 = vld [vmem:[#allocation8 + $0x18] sm:$0xff]
        %v994 = vld [vmem:[#allocation8 + $0x20] sm:$0xff]
        %v995 = vld [vmem:[#allocation8 + $0x28] sm:$0xff]
        %v996 = vld [vmem:[#allocation8 + $0x30] sm:$0xff]
        %v997 = vld [vmem:[#allocation8 + $0x38] sm:$0xff]
        %v998 = vld [vmem:[#allocation8 + $0x40] sm:$0xff]
        %v999 = vld [vmem:[#allocation8 + $0x48] sm:$0xff]
        %v1000 = vld [vmem:[#allocation8 + $0x50] sm:$0xff]
        %v1001 = vld [vmem:[#allocation8 + $0x58] sm:$0xff]
        %v1002 = vld [vmem:[#allocation8 + $0x60] sm:$0xff]
        %v1003 = vld [vmem:[#allocation8 + $0x68] sm:$0xff]
        %v1004 = vld [vmem:[#allocation8 + $0x70] sm:$0xff]
        %v1005 = vld [vmem:[#allocation8 + $0x78] sm:$0xff]
        %1006 = vmatprep.subr.mxu0 0.0
        %1007 = vmatpush1.msra.mxu0 %v990
        %1008 = vmatprep.subr.mxu0 0.0
        %1009 = vmatpush1.msra.mxu0 %v991
        %1010 = vmatprep.subr.mxu0 0.0
        %1011 = vmatpush1.msra.mxu0 %v992
        %1012 = vmatprep.subr.mxu0 0.0
        %1013 = vmatpush1.msra.mxu0 %v993
        %1014 = vmatprep.subr.mxu0 0.0
        %1015 = vmatpush1.msra.mxu0 %v994
        %1016 = vmatprep.subr.mxu0 0.0
        %1017 = vmatpush1.msra.mxu0 %v995
        %1018 = vmatprep.subr.mxu0 0.0
        %1019 = vmatpush1.msra.mxu0 %v996
        %1020 = vmatprep.subr.mxu0 0.0
        %1021 = vmatpush1.msra.mxu0 %v997
        %1022 = vmatprep.subr.mxu0 0.0
        %1023 = vmatpush1.msra.mxu0 %v998
        %1024 = vmatprep.subr.mxu0 0.0
        %1025 = vmatpush1.msra.mxu0 %v999
        %1026 = vmatprep.subr.mxu0 0.0
        %1027 = vmatpush1.msra.mxu0 %v1000
        %1028 = vmatprep.subr.mxu0 0.0
        %1029 = vmatpush1.msra.mxu0 %v1001
        %1030 = vmatprep.subr.mxu0 0.0
        %1031 = vmatpush1.msra.mxu0 %v1002
        %1032 = vmatprep.subr.mxu0 0.0
        %1033 = vmatpush1.msra.mxu0 %v1003
        %1034 = vmatprep.subr.mxu0 0.0
        %1035 = vmatpush1.msra.mxu0 %v1004
        %1036 = vmatprep.subr.mxu0 0.0
        %1037 = vmatpush1.msra.mxu0 %v1005
        %1038 = vmatprep.subr.mxu0 0.0
        %1039 = vmatpush1.msra.mxu0 0.0
        %1040 = vmatprep.subr.mxu0 0.0
        %1041 = vmatpush1.msra.mxu0 0.0
        %1042 = vmatprep.subr.mxu0 0.0
        %1043 = vmatpush1.msra.mxu0 0.0
        %1044 = vmatprep.subr.mxu0 0.0
        %1045 = vmatpush1.msra.mxu0 0.0
        %1046 = vmatprep.subr.mxu0 0.0
        %1047 = vmatpush1.msra.mxu0 0.0
        %1048 = vmatprep.subr.mxu0 0.0
        %1049 = vmatpush1.msra.mxu0 0.0
        %1050 = vmatprep.subr.mxu0 0.0
        %1051 = vmatpush1.msra.mxu0 0.0
        %1052 = vmatprep.subr.mxu0 0.0
        %1053 = vmatpush1.msra.mxu0 0.0
        %1054 = vmatprep.subr.mxu0 0.0
        %1055 = vmatpush1.msra.mxu0 0.0
        %1056 = vmatprep.subr.mxu0 0.0
        %1057 = vmatpush1.msra.mxu0 0.0
        %1058 = vmatprep.subr.mxu0 0.0
        %1059 = vmatpush1.msra.mxu0 0.0
        %1060 = vmatprep.subr.mxu0 0.0
        %1061 = vmatpush1.msra.mxu0 0.0
        %1062 = vmatprep.subr.mxu0 0.0
        %1063 = vmatpush1.msra.mxu0 0.0
        %1064 = vmatprep.subr.mxu0 0.0
        %1065 = vmatpush1.msra.mxu0 0.0
        %1066 = vmatprep.subr.mxu0 0.0
        %1067 = vmatpush1.msra.mxu0 0.0
        %1068 = vmatprep.subr.mxu0 0.0
        %1069 = vmatpush1.msra.mxu0 0.0
        %1070 = vmatprep.mubr.f32.mxu0 0.0
        %1071 = vmatmul.mubr.f32.gmra.mrb[0].mxu0 %v985
        %v1072 = vpop.f32.mrb[0].mxu0
        %v1073 = vadd.f32 0.0, %v1072
        %v1074 = vpop.f32.mrb[0].mxu0
        %1075 = vdwg.mxu0
        %v1076 = vmul.f32 %v1073, 0.03125
        %v1077 = vsub.f32 %v985, %v1076
        %v1078 = vmul.f32 %v1077, %v1077
        %1079 = vmatprep.subr.mxu0 0.0
        %1080 = vmatpush1.msra.mxu0 %v990
        %1081 = vmatprep.subr.mxu0 0.0
        %1082 = vmatpush1.msra.mxu0 %v991
        %1083 = vmatprep.subr.mxu0 0.0
        %1084 = vmatpush1.msra.mxu0 %v992
        %1085 = vmatprep.subr.mxu0 0.0
        %1086 = vmatpush1.msra.mxu0 %v993
        %1087 = vmatprep.subr.mxu0 0.0
        %1088 = vmatpush1.msra.mxu0 %v994
        %1089 = vmatprep.subr.mxu0 0.0
        %1090 = vmatpush1.msra.mxu0 %v995
        %1091 = vmatprep.subr.mxu0 0.0
        %1092 = vmatpush1.msra.mxu0 %v996
        %1093 = vmatprep.subr.mxu0 0.0
        %1094 = vmatpush1.msra.mxu0 %v997
        %1095 = vmatprep.subr.mxu0 0.0
        %1096 = vmatpush1.msra.mxu0 %v998
        %1097 = vmatprep.subr.mxu0 0.0
        %1098 = vmatpush1.msra.mxu0 %v999
        %1099 = vmatprep.subr.mxu0 0.0
        %1100 = vmatpush1.msra.mxu0 %v1000
        %1101 = vmatprep.subr.mxu0 0.0
        %1102 = vmatpush1.msra.mxu0 %v1001
        %1103 = vmatprep.subr.mxu0 0.0
        %1104 = vmatpush1.msra.mxu0 %v1002
        %1105 = vmatprep.subr.mxu0 0.0
        %1106 = vmatpush1.msra.mxu0 %v1003
        %1107 = vmatprep.subr.mxu0 0.0
        %1108 = vmatpush1.msra.mxu0 %v1004
        %1109 = vmatprep.subr.mxu0 0.0
        %1110 = vmatpush1.msra.mxu0 %v1005
        %1111 = vmatprep.subr.mxu0 0.0
        %1112 = vmatpush1.msra.mxu0 0.0
        %1113 = vmatprep.subr.mxu0 0.0
        %1114 = vmatpush1.msra.mxu0 0.0
        %1115 = vmatprep.subr.mxu0 0.0
        %1116 = vmatpush1.msra.mxu0 0.0
        %1117 = vmatprep.subr.mxu0 0.0
        %1118 = vmatpush1.msra.mxu0 0.0
        %1119 = vmatprep.subr.mxu0 0.0
        %1120 = vmatpush1.msra.mxu0 0.0
        %1121 = vmatprep.subr.mxu0 0.0
        %1122 = vmatpush1.msra.mxu0 0.0
        %1123 = vmatprep.subr.mxu0 0.0
        %1124 = vmatpush1.msra.mxu0 0.0
        %1125 = vmatprep.subr.mxu0 0.0
        %1126 = vmatpush1.msra.mxu0 0.0
        %1127 = vmatprep.subr.mxu0 0.0
        %1128 = vmatpush1.msra.mxu0 0.0
        %1129 = vmatprep.subr.mxu0 0.0
        %1130 = vmatpush1.msra.mxu0 0.0
        %1131 = vmatprep.subr.mxu0 0.0
        %1132 = vmatpush1.msra.mxu0 0.0
        %1133 = vmatprep.subr.mxu0 0.0
        %1134 = vmatpush1.msra.mxu0 0.0
        %1135 = vmatprep.subr.mxu0 0.0
        %1136 = vmatpush1.msra.mxu0 0.0
        %1137 = vmatprep.subr.mxu0 0.0
        %1138 = vmatpush1.msra.mxu0 0.0
        %1139 = vmatprep.subr.mxu0 0.0
        %1140 = vmatpush1.msra.mxu0 0.0
        %1141 = vmatprep.subr.mxu0 0.0
        %1142 = vmatpush1.msra.mxu0 0.0
        %1143 = vmatprep.mubr.f32.mxu0 0.0
        %1144 = vmatmul.mubr.f32.gmra.mrb[0].mxu0 %v1078
        %v1145 = vpop.f32.mrb[0].mxu0
        %v1146 = vadd.f32 0.0, %v1145
        %v1147 = vpop.f32.mrb[0].mxu0
        %1148 = vdwg.mxu0
        %v1149 = vmul.f32 %v1146, 0.03125
        %v1150 = vadd.f32 %v1149, 1e-05
        %v1151 = vrsqrt.pop %v1150
        %v1152 = vmul.f32 %v1077, %v1151
        %v1153 = vld [vmem:[%s6] sm:$0x1]
        %v1155 = vlaneseq
        %v1156 = vshrl.u32 %v1155, 7
        %v1157 = vsub.s32 0, %v1156
        %v1158 = vrot.slane %v1153, %v1157
        %v1160 = vmul.f32 %v1152, %v1158
        %v1161 = vld [vmem:[%s7] sm:$0x1]
        %v1163 = vlaneseq
        %v1164 = vshrl.u32 %v1163, 7
        %v1165 = vsub.s32 0, %v1164
        %v1166 = vrot.slane %v1161, %v1165
        %v1168 = vadd.f32 %v1160, %v1166
        %1169 = vst [vmem:[%s383] sm:$0xf] %v1168
        %s1170 = sand.u32 %s224, 1
        %s1171 = scalar_lea.sflag [#allocation4], %s1170
        %s1172 = sand.u32 %s224, 1
        %s1173 = smul.addr %s1172, 4
        %s1174 = scalar_lea.vmem [#allocation10], %s1173
        // Predicated region
        $region69: #{tpu_custom_call.1} parent=51 // pred_check
          %p1175 = pneg %p234
        $region70: #{tpu_custom_call.1} parent=51 // pred_check_branch
          %1177 = sbr.rel (%p1175) target = $region72
        $region71: #{tpu_custom_call.1} parent=51 // pred_region
          %s1179 = ssub.s32 64, 64
          %1180 = vsyncadd %s1171, %s1179
          %s1181 = sadd.s32 %s32, %s31
          %s1182 = smul.addr %s1181, 64
          %s1183 = scalar_lea.hbm %s8, %s1182
          %s1185 = sshll.u32 %s1174, 4
          %s1186 = int_to_ptr.vmem [resolvable:$true] %s1185
          %1188 = dma.vmem_to_hbm [thread:$0]  %s1186, 64, %s1183, %s1171
        $region72: #{tpu_custom_call.1} parent=51 // pred_fallthru
          _
      $region52: #{tpu_custom_call.1} parent=5 // pred_fallthru
        _
      %p1189 = scmp.le.s32.totalorder 2, %s22
      // Predicated region
      $region73: #{tpu_custom_call.1} parent=5 // pred_check
        %p1190 = pneg %p1189
      $region74: #{tpu_custom_call.1} parent=5 // pred_check_branch
        %1192 = sbr.rel (%p1190) target = $region76
      $region75: #{tpu_custom_call.1} parent=5 // pred_region
        %s1193 = ssub.s32 %s22, 2
        // Predicated region
        $region77: #{tpu_custom_call.1} parent=75 // pred_check
          %p1194 = pneg %p240
        $region78: #{tpu_custom_call.1} parent=75 // pred_check_branch
          %1196 = sbr.rel (%p1194) target = $region80
        $region79: #{tpu_custom_call.1} parent=75 // pred_region
          %s1197 = sand.u32 %s225, 1
          %s1198 = scalar_lea.sflag [#allocation4], %s1197
          %s1199 = sand.u32 %s225, 1
          %s1200 = smul.addr %s1199, 4
          %s1201 = scalar_lea.vmem [#allocation10], %s1200
          %1202 = dma.done %s1198, 64
        $region80: #{tpu_custom_call.1} parent=75 // pred_fallthru
          _
      $region76: #{tpu_custom_call.1} parent=5 // pred_fallthru
        _
    $region6: #{tpu_custom_call.1} parent=1 // loop_footer
      %s26 = sadd.s32 1, %s22
    $region7: #{tpu_custom_call.1} parent=1 // loop_footer_branch
      %21 = sbr.rel target = $region3
    $region8: #{tpu_custom_call.1} parent=1 // loop_exit
      _
    %1203 = vsyncpa [#allocation3], 1
    %s1204 = scalar_lea.sflag [#allocation3], 1
    %1205 = vsyncpa %s1204, 1
    %1206 = vsyncpa [#allocation6], 1
    %1207 = vsyncpa [#allocation9], 1
    %1208 = vsyncpa [#allocation4], 1
    %s1209 = scalar_lea.sflag [#allocation4], 1
    %1210 = vsyncpa %s1209, 1

</llo_original>
